<compile_context>
chip_gen: v7x
topology: tpu7x:2x2x1
jax: 0.10.0
libtpu: 0.0.40
codegen_flags: <defaults>
</compile_context>

<pallas_src>
import jax
import jax.numpy as jnp
from jax.experimental import pallas as pl
from jax.experimental.pallas import tpu as pltpu


def row_attention(x, conv_weight, *, tile_h=None):
    """RowAttention forward.

    x:            (B, C, H, W) float32, NCHW (torch convention).
    conv_weight:  (1, 1, K, K) Conv2d(1, 1, K, padding=K//2, bias=False) weight.
    returns:      (B, 1, C, W) float32.
    """
    B, C, H, W = x.shape
    k2d = conv_weight.reshape(conv_weight.shape[-2], conv_weight.shape[-1])
    K = k2d.shape[0]
    pad = (K - 1) // 2

    # --- choose the H tile (reduction axis of the mean) -----------------------
    if tile_h is None:
        if H % 8 == 0:
            tile_h = min(H, 512)
            while H % tile_h:
                tile_h -= 8
        else:
            tile_h = H
    assert H % tile_h == 0 and (tile_h == H or tile_h % 8 == 0)
    n_h = H // tile_h

    # --- fold the conv's W-direction taps into K banded (W, W) matrices -------
    # band[a, p, q] = k2d[a, p - q + pad] if |p - q| <= pad else 0, scaled by
    # 1/H, so that  out[c, :] = sum_a  row_sum_padded[c + a, :] @ band[a].
    idx = jnp.arange(W)
    diff = idx[:, None] - idx[None, :] + pad                   # (W, W)
    mask = (diff >= 0) & (diff <= K - 1)
    band = jnp.where(mask[None], k2d[:, jnp.clip(diff, 0, K - 1)], 0.0)
    band = (band / H).astype(jnp.float32)                      # (K, W, W)

    def kernel(x_ref, band_ref, out_ref, sum_ref):
        h = pl.program_id(1)

        @pl.when(h == 0)
        def _init():
            sum_ref[...] = jnp.zeros_like(sum_ref)

        # x_ref block: (1, C, tile_h, W); accumulate the H-sum (mean numerator)
        # into the interior rows of the zero-padded scratch.
        xb = x_ref[0]                                          # (C, tile_h, W)
        sum_ref[pad:pad + C, :] = sum_ref[pad:pad + C, :] + jnp.sum(xb, axis=1)

        @pl.when(h == pl.num_programs(1) - 1)
        def _finish():
            acc = jnp.zeros((C, W), jnp.float32)
            for a in range(K):                                 # static, unrolled
                acc = acc + jnp.dot(sum_ref[a:a + C, :], band_ref[a],
                                    preferred_element_type=jnp.float32)
            out_ref[0, 0] = (1.0 / (1.0 + jnp.exp(-acc))).astype(out_ref.dtype)

    return pl.pallas_call(
        kernel,
        out_shape=jax.ShapeDtypeStruct((B, 1, C, W), x.dtype),
        grid_spec=pltpu.PrefetchScalarGridSpec(
            num_scalar_prefetch=0,
            grid=(B, n_h),
            in_specs=[
                pl.BlockSpec((1, C, tile_h, W), lambda b, h: (b, 0, h, 0)),  # x tile
                pl.BlockSpec((K, W, W), lambda b, h: (0, 0, 0)),             # band (resident)
            ],
            out_specs=pl.BlockSpec((1, 1, C, W), lambda b, h: (b, 0, 0, 0)),
            scratch_shapes=[pltpu.VMEM((C + K - 1, W), jnp.float32)],
        ),
        compiler_params=pltpu.CompilerParams(
            dimension_semantics=("parallel", "arbitrary")),
    )(x, band)


def _reference(x, conv_weight):
    """Pure-JAX reference mirroring the torch forward (NCHW)."""
    avg = jnp.mean(jnp.transpose(x, (0, 2, 1, 3)), axis=1, keepdims=True)  # (B,1,C,W)
    K = conv_weight.shape[-1]
    pad = (K - 1) // 2
    out = jax.lax.conv_general_dilated(
        avg, conv_weight, window_strides=(1, 1),
        padding=((pad, pad), (pad, pad)),
        dimension_numbers=("NCHW", "OIHW", "NCHW"),
        precision=jax.lax.Precision.HIGHEST)
    return jax.nn.sigmoid(out)


if __name__ == "__main__":
    B, C, H, W = 2, 4, 16, 16
    KSIZE = 7

    key = jax.random.PRNGKey(0)
    kx, kw = jax.random.split(key)
    x = jax.random.normal(kx, (B, C, H, W), jnp.float32)
    # torch Conv2d(1, 1, 7, padding=3, bias=False) weight layout: (1, 1, 7, 7)
    conv_w = 0.1 * jax.random.normal(kw, (1, 1, KSIZE, KSIZE), jnp.float32)

    out = row_attention(x, conv_w, tile_h=8)   # tile_h=8 -> 2 reduction steps per batch
    out = jax.block_until_ready(out)

    ref = _reference(x, conv_w)
    assert out.shape == (B, 1, C, W)
    assert jnp.allclose(out, ref, atol=1e-4, rtol=1e-4), "mismatch vs reference"

    print("KERNEL_OK")
</pallas_src>

<mosaic_0001>
module attributes {stable_mosaic.version = 11 : i64} {
  func.func @kernel(%arg0: i32, %arg1: i32, %arg2: memref<1x4x8x16xf32, #tpu.memory_space<vmem>>, %arg3: memref<7x16x16xf32, #tpu.memory_space<vmem>>, %arg4: memref<1x1x4x16xf32, #tpu.memory_space<vmem>>, %arg5: memref<10x16xf32, #tpu.memory_space<vmem>>) attributes {dimension_semantics = [#tpu.dimension_semantics<parallel>, #tpu.dimension_semantics<arbitrary>], iteration_bounds = array<i64: 2, 2>, scalar_prefetch = 0 : i64, scratch_operands = 1 : i64, tpu.core_type = #tpu.core_type<tc>, window_params = [{transform_indices = @transform_0, window_bounds = array<i64: 1, 4, 8, 16>}, {pipeline_mode = #tpu.pipeline_mode<synchronous>, transform_indices = @transform_1, window_bounds = array<i64: 7, 16, 16>}, {transform_indices = @transform_2, window_bounds = array<i64: 1, 1, 4, 16>}]} {
    %c0_i32 = arith.constant 0 : i32
    %0 = arith.cmpi eq, %arg1, %c0_i32 : i32
    %1 = arith.extui %0 : i1 to i32
    %c0_i32_0 = arith.constant 0 : i32
    %2 = arith.cmpi ne, %1, %c0_i32_0 : i32
    scf.if %2 {
      %cst_8 = arith.constant 0.000000e+00 : f32
      %12 = vector.broadcast %cst_8 : f32 to vector<10x16xf32>
      %c0_9 = arith.constant 0 : index
      %c0_10 = arith.constant 0 : index
      %13 = vector.load %arg5[%c0_9, %c0_10] : memref<10x16xf32, #tpu.memory_space<vmem>>, vector<10x16xf32>
      tpu.vector_store %arg5[%c0_9, %c0_10], %12 {strides = array<i32>} : memref<10x16xf32, #tpu.memory_space<vmem>>, vector<10x16xf32>,
    } else {
    }
    %c0 = arith.constant 0 : index
    %c0_1 = arith.constant 0 : index
    %c0_2 = arith.constant 0 : index
    %c0_3 = arith.constant 0 : index
    %3 = vector.load %arg2[%c0, %c0_1, %c0_2, %c0_3] : memref<1x4x8x16xf32, #tpu.memory_space<vmem>>, vector<1x4x8x16xf32>
    %4 = vector.shape_cast %3 : vector<1x4x8x16xf32> to vector<4x8x16xf32>
    %c3 = arith.constant 3 : index
    %c0_4 = arith.constant 0 : index
    %5 = vector.load %arg5[%c3, %c0_4] : memref<10x16xf32, #tpu.memory_space<vmem>>, vector<4x16xf32>
    %cst = arith.constant dense<0.000000e+00> : vector<4x16xf32>
    %6 = vector.multi_reduction <add>, %4, %cst [1] : vector<4x8x16xf32> to vector<4x16xf32>
    %7 = arith.addf %5, %6 : vector<4x16xf32>
    %c3_5 = arith.constant 3 : index
    %c0_6 = arith.constant 0 : index
    %8 = vector.load %arg5[%c3_5, %c0_6] : memref<10x16xf32, #tpu.memory_space<vmem>>, vector<4x16xf32>
    tpu.vector_store %arg5[%c3_5, %c0_6], %7 {strides = array<i32>} : memref<10x16xf32, #tpu.memory_space<vmem>>, vector<4x16xf32>,
    %c1_i32 = arith.constant 1 : i32
    %9 = arith.cmpi eq, %arg1, %c1_i32 : i32
    %10 = arith.extui %9 : i1 to i32
    %c0_i32_7 = arith.constant 0 : i32
    %11 = arith.cmpi ne, %10, %c0_i32_7 : i32
    scf.if %11 {
      %cst_8 = arith.constant 0.000000e+00 : f32
      %12 = vector.broadcast %cst_8 : f32 to vector<4x16xf32>
      %c0_9 = arith.constant 0 : index
      %c0_10 = arith.constant 0 : index
      %13 = vector.load %arg5[%c0_9, %c0_10] : memref<10x16xf32, #tpu.memory_space<vmem>>, vector<4x16xf32>
      %c0_11 = arith.constant 0 : index
      %c0_12 = arith.constant 0 : index
      %c0_13 = arith.constant 0 : index
      %14 = vector.load %arg3[%c0_11, %c0_12, %c0_13] : memref<7x16x16xf32, #tpu.memory_space<vmem>>, vector<1x16x16xf32>
      %15 = vector.shape_cast %14 : vector<1x16x16xf32> to vector<16x16xf32>
      %cst_14 = arith.constant dense<0.000000e+00> : vector<4x16xf32>
      %16 = tpu.matmul %13, %15, %cst_14 {dimension_numbers = #tpu.dot_dimension_numbers<[1], [0], [0], [1], [0, 0, 1, 1], [], []>} : vector<4x16xf32>, vector<16x16xf32>, vector<4x16xf32> -> vector<4x16xf32>
      %17 = arith.addf %12, %16 : vector<4x16xf32>
      %c1 = arith.constant 1 : index
      %c0_15 = arith.constant 0 : index
      %18 = vector.load %arg5[%c1, %c0_15] : memref<10x16xf32, #tpu.memory_space<vmem>>, vector<4x16xf32>
      %c1_16 = arith.constant 1 : index
      %c0_17 = arith.constant 0 : index
      %c0_18 = arith.constant 0 : index
      %19 = vector.load %arg3[%c1_16, %c0_17, %c0_18] : memref<7x16x16xf32, #tpu.memory_space<vmem>>, vector<1x16x16xf32>
      %20 = vector.shape_cast %19 : vector<1x16x16xf32> to vector<16x16xf32>
      %cst_19 = arith.constant dense<0.000000e+00> : vector<4x16xf32>
      %21 = tpu.matmul %18, %20, %cst_19 {dimension_numbers = #tpu.dot_dimension_numbers<[1], [0], [0], [1], [0, 0, 1, 1], [], []>} : vector<4x16xf32>, vector<16x16xf32>, vector<4x16xf32> -> vector<4x16xf32>
      %22 = arith.addf %17, %21 : vector<4x16xf32>
      %c2 = arith.constant 2 : index
      %c0_20 = arith.constant 0 : index
      %23 = vector.load %arg5[%c2, %c0_20] : memref<10x16xf32, #tpu.memory_space<vmem>>, vector<4x16xf32>
      %c2_21 = arith.constant 2 : index
      %c0_22 = arith.constant 0 : index
      %c0_23 = arith.constant 0 : index
      %24 = vector.load %arg3[%c2_21, %c0_22, %c0_23] : memref<7x16x16xf32, #tpu.memory_space<vmem>>, vector<1x16x16xf32>
      %25 = vector.shape_cast %24 : vector<1x16x16xf32> to vector<16x16xf32>
      %cst_24 = arith.constant dense<0.000000e+00> : vector<4x16xf32>
      %26 = tpu.matmul %23, %25, %cst_24 {dimension_numbers = #tpu.dot_dimension_numbers<[1], [0], [0], [1], [0, 0, 1, 1], [], []>} : vector<4x16xf32>, vector<16x16xf32>, vector<4x16xf32> -> vector<4x16xf32>
      %27 = arith.addf %22, %26 : vector<4x16xf32>
      %c3_25 = arith.constant 3 : index
      %c0_26 = arith.constant 0 : index
      %28 = vector.load %arg5[%c3_25, %c0_26] : memref<10x16xf32, #tpu.memory_space<vmem>>, vector<4x16xf32>
      %c3_27 = arith.constant 3 : index
      %c0_28 = arith.constant 0 : index
      %c0_29 = arith.constant 0 : index
      %29 = vector.load %arg3[%c3_27, %c0_28, %c0_29] : memref<7x16x16xf32, #tpu.memory_space<vmem>>, vector<1x16x16xf32>
      %30 = vector.shape_cast %29 : vector<1x16x16xf32> to vector<16x16xf32>
      %cst_30 = arith.constant dense<0.000000e+00> : vector<4x16xf32>
      %31 = tpu.matmul %28, %30, %cst_30 {dimension_numbers = #tpu.dot_dimension_numbers<[1], [0], [0], [1], [0, 0, 1, 1], [], []>} : vector<4x16xf32>, vector<16x16xf32>, vector<4x16xf32> -> vector<4x16xf32>
      %32 = arith.addf %27, %31 : vector<4x16xf32>
      %c4 = arith.constant 4 : index
      %c0_31 = arith.constant 0 : index
      %33 = vector.load %arg5[%c4, %c0_31] : memref<10x16xf32, #tpu.memory_space<vmem>>, vector<4x16xf32>
      %c4_32 = arith.constant 4 : index
      %c0_33 = arith.constant 0 : index
      %c0_34 = arith.constant 0 : index
      %34 = vector.load %arg3[%c4_32, %c0_33, %c0_34] : memref<7x16x16xf32, #tpu.memory_space<vmem>>, vector<1x16x16xf32>
      %35 = vector.shape_cast %34 : vector<1x16x16xf32> to vector<16x16xf32>
      %cst_35 = arith.constant dense<0.000000e+00> : vector<4x16xf32>
      %36 = tpu.matmul %33, %35, %cst_35 {dimension_numbers = #tpu.dot_dimension_numbers<[1], [0], [0], [1], [0, 0, 1, 1], [], []>} : vector<4x16xf32>, vector<16x16xf32>, vector<4x16xf32> -> vector<4x16xf32>
      %37 = arith.addf %32, %36 : vector<4x16xf32>
      %c5 = arith.constant 5 : index
      %c0_36 = arith.constant 0 : index
      %38 = vector.load %arg5[%c5, %c0_36] : memref<10x16xf32, #tpu.memory_space<vmem>>, vector<4x16xf32>
      %c5_37 = arith.constant 5 : index
      %c0_38 = arith.constant 0 : index
      %c0_39 = arith.constant 0 : index
      %39 = vector.load %arg3[%c5_37, %c0_38, %c0_39] : memref<7x16x16xf32, #tpu.memory_space<vmem>>, vector<1x16x16xf32>
      %40 = vector.shape_cast %39 : vector<1x16x16xf32> to vector<16x16xf32>
      %cst_40 = arith.constant dense<0.000000e+00> : vector<4x16xf32>
      %41 = tpu.matmul %38, %40, %cst_40 {dimension_numbers = #tpu.dot_dimension_numbers<[1], [0], [0], [1], [0, 0, 1, 1], [], []>} : vector<4x16xf32>, vector<16x16xf32>, vector<4x16xf32> -> vector<4x16xf32>
      %42 = arith.addf %37, %41 : vector<4x16xf32>
      %c6 = arith.constant 6 : index
      %c0_41 = arith.constant 0 : index
      %43 = vector.load %arg5[%c6, %c0_41] : memref<10x16xf32, #tpu.memory_space<vmem>>, vector<4x16xf32>
      %c6_42 = arith.constant 6 : index
      %c0_43 = arith.constant 0 : index
      %c0_44 = arith.constant 0 : index
      %44 = vector.load %arg3[%c6_42, %c0_43, %c0_44] : memref<7x16x16xf32, #tpu.memory_space<vmem>>, vector<1x16x16xf32>
      %45 = vector.shape_cast %44 : vector<1x16x16xf32> to vector<16x16xf32>
      %cst_45 = arith.constant dense<0.000000e+00> : vector<4x16xf32>
      %46 = tpu.matmul %43, %45, %cst_45 {dimension_numbers = #tpu.dot_dimension_numbers<[1], [0], [0], [1], [0, 0, 1, 1], [], []>} : vector<4x16xf32>, vector<16x16xf32>, vector<4x16xf32> -> vector<4x16xf32>
      %47 = arith.addf %42, %46 : vector<4x16xf32>
      %cst_46 = arith.constant 0.000000e+00 : f32
      %48 = vector.broadcast %cst_46 : f32 to vector<4x16xf32>
      %49 = arith.subf %48, %47 : vector<4x16xf32>
      %50 = math.exp %49 : vector<4x16xf32>
      %cst_47 = arith.constant 1.000000e+00 : f32
      %51 = vector.broadcast %cst_47 : f32 to vector<4x16xf32>
      %52 = arith.addf %51, %50 : vector<4x16xf32>
      %cst_48 = arith.constant 1.000000e+00 : f32
      %53 = vector.broadcast %cst_48 : f32 to vector<4x16xf32>
      %54 = arith.divf %53, %52 : vector<4x16xf32>
      %c0_49 = arith.constant 0 : index
      %c0_50 = arith.constant 0 : index
      %c0_51 = arith.constant 0 : index
      %c0_52 = arith.constant 0 : index
      %55 = vector.load %arg4[%c0_49, %c0_50, %c0_51, %c0_52] : memref<1x1x4x16xf32, #tpu.memory_space<vmem>>, vector<1x1x4x16xf32>
      %56 = vector.shape_cast %55 : vector<1x1x4x16xf32> to vector<4x16xf32>
      %57 = vector.shape_cast %54 : vector<4x16xf32> to vector<1x1x4x16xf32>
      tpu.vector_store %arg4[%c0_49, %c0_50, %c0_51, %c0_52], %57 {strides = array<i32>} : memref<1x1x4x16xf32, #tpu.memory_space<vmem>>, vector<1x1x4x16xf32>,
    } else {
    }
    return
  }
  func.func @transform_0(%arg0: i32, %arg1: i32) -> (i32, i32, i32, i32) {
    %c0_i32 = arith.constant 0 : i32
    %c0_i32_0 = arith.constant 0 : i32
    %c0_i32_1 = arith.constant 0 : i32
    return %arg0, %c0_i32, %arg1, %c0_i32_0 : i32, i32, i32, i32
  }
  func.func @transform_1(%arg0: i32, %arg1: i32) -> (i32, i32, i32) {
    %c0_i32 = arith.constant 0 : i32
    %c0_i32_0 = arith.constant 0 : i32
    %c0_i32_1 = arith.constant 0 : i32
    %c0_i32_2 = arith.constant 0 : i32
    return %c0_i32, %c0_i32_0, %c0_i32_1 : i32, i32, i32
  }
  func.func @transform_2(%arg0: i32, %arg1: i32) -> (i32, i32, i32, i32) {
    %c0_i32 = arith.constant 0 : i32
    %c0_i32_0 = arith.constant 0 : i32
    %c0_i32_1 = arith.constant 0 : i32
    %c0_i32_2 = arith.constant 0 : i32
    return %arg0, %c0_i32, %c0_i32_0, %c0_i32_1 : i32, i32, i32, i32
  }
}

</mosaic_0001>

<llo_original>
// kernel: tpu_custom_call.1
$region0: #{tpu_custom_call.1}
  #allocation0 [shape = 'u32[]', space=smem, size = 0x4, offset = 0x4, fixed_abs, tag = 'smem constant byte address 0x4 - core index']
  #allocation1 [shape = 'u32[144,128]{1,0:T(1,128)}', space=vmem, size = 0x12000, scoped, tag = 'internal scratch']
  #allocation2 [shape = 'f32[10,16]{1,0:T(8,128)}', space=vmem, size = 0x2000, scoped, tag = 'scratch operand']
  %s0 = inlined_call_operand.hbm [shape: f32[2,4,16,16], index: 0, kind: input, shape index: {}]
  %s1 = inlined_call_operand.hbm [shape: f32[7,16,16], index: 1, kind: input, shape index: {}]
  %s2 = inlined_call_operand.hbm [shape: f32[2,1,4,16], index: 2, kind: output, shape index: {}]
  %s3 = sld [smem:[#allocation0]]
  $region57: #{tpu_custom_call.1} parent=0
    _
  %s5 = ssub.s32 1, %s3
  %s6 = scalar_select 0, %s5, %s3
  $region1: #{tpu_custom_call.1} parent=0
    #allocation3 [shape = 'u8[32768]{0}', space=vmem, size = 0x8000, scoped, tag = 'input window, operand 0']
    #allocation4 [shape = 's32[2]{0}', space=sflag, size = 0x8, scoped, tag = 'scoped memory for tpu_custom_call.1']
    #allocation5 [shape = 's32[2]{0}', space=sflag, size = 0x8, scoped, tag = 'scoped memory for tpu_custom_call.1']
    #allocation6 [shape = 'u8[57344]{0}', space=vmem, size = 0xe000, scoped, tag = 'input window, operand 1, single buffered']
    #allocation7 [shape = 's32[1]{0}', space=sflag, size = 0x4, scoped, tag = 'scoped memory for tpu_custom_call.1']
    #allocation8 [shape = 'u8[4096]{0}', space=vmem, size = 0x1000, scoped, tag = 'output window, operand 0']
    %7 = vsyncpa [#allocation4], 0
    %s8 = scalar_lea.sflag [#allocation4], 1
    %9 = vsyncpa %s8, 0
    %10 = vsyncpa [#allocation7], 0
    %11 = vsyncpa [#allocation5], 0
    %s12 = scalar_lea.sflag [#allocation5], 1
    %13 = vsyncpa %s12, 0
    loop: start=0, step=1, limit=6
    $region2: #{tpu_custom_call.1} parent=1 // loop_pre_header
      _
    $region3: #{tpu_custom_call.1} parent=1 // loop_header
      %s15 = sphi 0, %s19
      %p16 = scmp.ge.s32.totalorder %s15, 6
      %s22 = sphi 0, %s34
      %s23 = sphi 0, %s30
      %s24 = sphi 0, %s22
      %s25 = sphi 0, %s23
      %s26 = sphi 0, %s24
      %s27 = sphi 0, %s25
      %s39 = sphi 0, %s41
      %s42 = sphi 0, %s39
      %s43 = sphi 0, %s42
      %s59 = sphi 0, %s43
      %s63 = sphi 0, %s63
      %s65 = sphi 0, %s63
      %s66 = sphi 0, %s65
      %s80 = sphi 0, %s66
      %s86 = sphi 0, %s88
      %s89 = sphi 0, %s86
      %s90 = sphi 0, %s89
      %s106 = sphi 0, %s90
    $region4: #{tpu_custom_call.1} parent=1 // loop_header_branch
      %18 = sbr.rel (%p16) target = $region8
    $region5: #{tpu_custom_call.1} parent=1 // loop_body
      %s20 = ssub.s32 %s15, 1
      %s21 = ssub.s32 %s15, 2
      %s28 = sadd.s32 1, %s23
      %p29 = scmp.ge.s32.totalorder %s28, 2
      %s30 = scalar_select %p29, 0, %s28
      %s31 = sadd.s32 1, %s22
      %s32 = scalar_select %p29, %s31, %s22
      %p33 = scmp.ge.s32.totalorder %s32, 2
      %s34 = scalar_select %p33, 0, %s32
      %s35 = ssub.s32 %s22, %s34
      %s36 = ssub.s32 %s23, %s30
      %s37 = sor.u32 %s35, %s36
      %p38 = scmp.eq.s32.totalorder %s37, 0
      %s40 = sadd.s32 %s39, 1
      %s41 = scalar_select %p38, %s39, %s40
      %p44 = pneg %p38
      %p45 = scmp.eq.s32.totalorder %s15, 3
      %p46 = por %p44, %p45
      %p47 = scmp.ne.s32.totalorder %s39, %s42
      %p48 = scmp.eq.s32.totalorder %s15, 0
      %p49 = por %p47, %p48
      %p50 = scmp.ne.s32.totalorder %s39, %s42
      %p51 = scmp.eq.s32.totalorder %s20, 3
      %p52 = por %p50, %p51
      %p53 = scmp.ne.s32.totalorder %s42, %s43
      %p54 = scmp.eq.s32.totalorder %s20, 0
      %p55 = por %p53, %p54
      %p56 = scmp.ne.s32.totalorder %s42, %s43
      %p57 = scmp.eq.s32.totalorder %s21, 3
      %p58 = por %p56, %p57
      %p60 = scmp.ne.s32.totalorder %s43, %s59
      %p61 = scmp.eq.s32.totalorder %s21, 0
      %p62 = por %p60, %p61
      %s64 = sadd.s32 %s63, 1
      %p67 = scmp.eq.s32.totalorder %s15, 3
      %p68 = scmp.ne.s32.totalorder %s63, %s65
      %p69 = scmp.eq.s32.totalorder %s15, 0
      %p70 = por %p68, %p69
      %p71 = scmp.ne.s32.totalorder %s63, %s65
      %p72 = scmp.eq.s32.totalorder %s20, 3
      %p73 = por %p71, %p72
      %p74 = scmp.ne.s32.totalorder %s65, %s66
      %p75 = scmp.eq.s32.totalorder %s20, 0
      %p76 = por %p74, %p75
      %p77 = scmp.ne.s32.totalorder %s65, %s66
      %p78 = scmp.eq.s32.totalorder %s21, 3
      %p79 = por %p77, %p78
      %p81 = scmp.ne.s32.totalorder %s66, %s80
      %p82 = scmp.eq.s32.totalorder %s21, 0
      %p83 = por %p81, %p82
      %s84 = ssub.s32 %s22, %s34
      %p85 = scmp.eq.s32.totalorder %s84, 0
      %s87 = sadd.s32 %s86, 1
      %s88 = scalar_select %p85, %s86, %s87
      %p91 = pneg %p85
      %p92 = scmp.eq.s32.totalorder %s15, 3
      %p93 = por %p91, %p92
      %p94 = scmp.ne.s32.totalorder %s86, %s89
      %p95 = scmp.eq.s32.totalorder %s15, 0
      %p96 = por %p94, %p95
      %p97 = scmp.ne.s32.totalorder %s86, %s89
      %p98 = scmp.eq.s32.totalorder %s20, 3
      %p99 = por %p97, %p98
      %p100 = scmp.ne.s32.totalorder %s89, %s90
      %p101 = scmp.eq.s32.totalorder %s20, 0
      %p102 = por %p100, %p101
      %p103 = scmp.ne.s32.totalorder %s89, %s90
      %p104 = scmp.eq.s32.totalorder %s21, 3
      %p105 = por %p103, %p104
      %p107 = scmp.ne.s32.totalorder %s90, %s106
      %p108 = scmp.eq.s32.totalorder %s21, 0
      %p109 = por %p107, %p108
      %p110 = scmp.le.s32.totalorder 1, %s15
      %p111 = scmp.lt.s32.totalorder %s15, 5
      %p112 = pnand %p110, %p111
      %p113 = pneg %p112
      // Predicated region
      $region9: #{tpu_custom_call.1} parent=5 // pred_check
        _
      $region10: #{tpu_custom_call.1} parent=5 // pred_check_branch
        %115 = sbr.rel (%p112) target = $region12
      $region11: #{tpu_custom_call.1} parent=5 // pred_region
        %s116 = ssub.s32 %s15, 1
        // Predicated region
        $region13: #{tpu_custom_call.1} parent=11 // pred_check
          %p117 = pneg %p76
        $region14: #{tpu_custom_call.1} parent=11 // pred_check_branch
          %119 = sbr.rel (%p117) target = $region16
        $region15: #{tpu_custom_call.1} parent=11 // pred_region
          %s121 = ssub.s32 1792, 1792
          %122 = vsyncadd [#allocation7], %s121
          %s123 = sshll.u32 [#allocation6], 4
          %s124 = int_to_ptr.vmem [resolvable:$true] %s123
          %129 = dma.hbm_to_vmem [thread:$0]  %s1, 1792, %s124, [#allocation7], 128, 128, 8
        $region16: #{tpu_custom_call.1} parent=11 // pred_fallthru
          _
      $region12: #{tpu_custom_call.1} parent=5 // pred_fallthru
        _
      %p130 = scmp.lt.s32.totalorder %s15, 4
      // Predicated region
      $region17: #{tpu_custom_call.1} parent=5 // pred_check
        %p131 = pneg %p130
      $region18: #{tpu_custom_call.1} parent=5 // pred_check_branch
        %133 = sbr.rel (%p131) target = $region20
      $region19: #{tpu_custom_call.1} parent=5 // pred_region
        // Predicated region
        $region21: #{tpu_custom_call.1} parent=19 // pred_check
          %p134 = pneg %p49
        $region22: #{tpu_custom_call.1} parent=19 // pred_check_branch
          %136 = sbr.rel (%p134) target = $region24
        $region23: #{tpu_custom_call.1} parent=19 // pred_region
          %s137 = sand.u32 %s39, 1
          %s138 = scalar_lea.sflag [#allocation4], %s137
          %s139 = sand.u32 %s39, 1
          %s140 = smul.addr %s139, 32
          %s141 = scalar_lea.vmem [#allocation3], %s140
          %s143 = ssub.s32 512, 512
          %144 = vsyncadd %s138, %s143
          %s145 = smul.addr %s22, 8
          %s146 = sadd.s32 %s23, %s145
          %s147 = smul.addr %s146, 128
          %s148 = scalar_lea.hbm %s0, %s147
          %s149 = sshll.u32 %s141, 4
          %s150 = int_to_ptr.vmem [resolvable:$true] %s149
          %155 = dma.hbm_to_vmem [thread:$0]  %s148, 512, %s150, %s138, 256, 128, 8
        $region24: #{tpu_custom_call.1} parent=19 // pred_fallthru
          _
      $region20: #{tpu_custom_call.1} parent=5 // pred_fallthru
        _
      %p156 = scmp.le.s32.totalorder 1, %s15
      %p157 = scmp.lt.s32.totalorder %s15, 5
      %p158 = pnand %p156, %p157
      %p159 = pneg %p158
      // Predicated region
      $region25: #{tpu_custom_call.1} parent=5 // pred_check
        _
      $region26: #{tpu_custom_call.1} parent=5 // pred_check_branch
        %161 = sbr.rel (%p158) target = $region28
      $region27: #{tpu_custom_call.1} parent=5 // pred_region
        %s162 = ssub.s32 %s15, 1
        %s163 = sand.u32 %s42, 1
        %s164 = scalar_lea.sflag [#allocation4], %s163
        %s165 = sand.u32 %s42, 1
        %s166 = smul.addr %s165, 32
        %s167 = scalar_lea.vmem [#allocation3], %s166
        // Predicated region
        $region29: #{tpu_custom_call.1} parent=27 // pred_check
          %p168 = pneg %p55
        $region30: #{tpu_custom_call.1} parent=27 // pred_check_branch
          %170 = sbr.rel (%p168) target = $region32
        $region31: #{tpu_custom_call.1} parent=27 // pred_region
          %171 = dma.done %s164, 512
        $region32: #{tpu_custom_call.1} parent=27 // pred_fallthru
          _
        // Predicated region
        $region33: #{tpu_custom_call.1} parent=27 // pred_check
          %p172 = pneg %p76
        $region34: #{tpu_custom_call.1} parent=27 // pred_check_branch
          %174 = sbr.rel (%p172) target = $region36
        $region35: #{tpu_custom_call.1} parent=27 // pred_region
          %175 = dma.done [#allocation7], 1792
        $region36: #{tpu_custom_call.1} parent=27 // pred_fallthru
          _
        %s176 = sand.u32 %s42, 1
        %s177 = scalar_lea.sflag [#allocation4], %s176
        %s178 = sand.u32 %s42, 1
        %s179 = smul.addr %s178, 32
        %s180 = scalar_lea.vmem [#allocation3], %s179
        %p181 = pneg %p55
        %p182 = pneg %p52
        %p183 = pneg %p76
        %p184 = pneg %p73
        %p185 = pneg %p102
        %p186 = pneg %p99
        %s187 = sand.u32 %s89, 1
        %s188 = scalar_lea.sflag [#allocation5], %s187
        %s189 = sand.u32 %s89, 1
        %s190 = smul.addr %s189, 4
        %s191 = scalar_lea.vmem [#allocation8], %s190
        %p192 = scmp.eq.s32.totalorder %s25, 0
        // Predicated region
        $region37: #{tpu_custom_call.1} parent=27 // pred_check
          %p193 = pneg %p192
        $region38: #{tpu_custom_call.1} parent=27 // pred_check_branch
          %195 = sbr.rel (%p193) target = $region40
        $region39: #{tpu_custom_call.1} parent=27 // pred_region
          %vm196 = vcmask 130048
          %197 = vst.msk [vmem:[#allocation2] sm:$0xff] %vm196, 0.0
          %vm198 = vcmask 123904
          %199 = vst.msk [vmem:[#allocation2 + $0x8] sm:$0x3] %vm198, 0.0
        $region40: #{tpu_custom_call.1} parent=27 // pred_fallthru
          _
        %v200 = vld [vmem:[%s167] sm:$0xff]
        %v201 = vld [vmem:[%s167 + $0x8] sm:$0xff]
        %v202 = vld [vmem:[%s167 + $0x10] sm:$0xff]
        %v203 = vld [vmem:[%s167 + $0x18] sm:$0xff]
        %v204 = vld [vmem:[#allocation2 + $0x3] sm:$0xf]
        %vm205 = vcmask 130048
        %v206 = vsel %vm205, %v200, 0.0
        %v207 = vrot.slane %v206, 4
        %v208 = vadd.f32 %v206, %v207
        %v209 = vrot.slane %v208, 2
        %v210 = vadd.f32 %v208, %v209
        %v211 = vrot.slane %v210, 1
        %v212 = vadd.f32 %v210, %v211
        %v213 = vsel %vm205, %v201, 0.0
        %v214 = vrot.slane %v213, 4
        %v215 = vadd.f32 %v213, %v214
        %v216 = vrot.slane %v215, 2
        %v217 = vadd.f32 %v215, %v216
        %v218 = vrot.slane %v217, 1
        %v219 = vadd.f32 %v217, %v218
        %v220 = vsel %vm205, %v202, 0.0
        %v221 = vrot.slane %v220, 4
        %v222 = vadd.f32 %v220, %v221
        %v223 = vrot.slane %v222, 2
        %v224 = vadd.f32 %v222, %v223
        %v225 = vrot.slane %v224, 1
        %v226 = vadd.f32 %v224, %v225
        %v227 = vsel %vm205, %v203, 0.0
        %v228 = vrot.slane %v227, 4
        %v229 = vadd.f32 %v227, %v228
        %v230 = vrot.slane %v229, 2
        %v231 = vadd.f32 %v229, %v230
        %v232 = vrot.slane %v231, 1
        %v233 = vadd.f32 %v231, %v232
        %vm238 = vcmask 1041409
        %v239 = vsel %vm238, %v219, %v212
        %vm240 = vcmask 1042434
        %v241 = vsel %vm240, %v226, %v239
        %vm242 = vcmask 1043459
        %v243 = vsel %vm242, %v233, %v241
        %v245 = vadd.f32 %v204, %v243
        %vm246 = vcmask 125952
        %247 = vst.msk [vmem:[#allocation2 + $0x3] sm:$0xf] %vm246, %v245
        %p248 = scmp.eq.s32.totalorder %s25, 1
        // Predicated region
        $region41: #{tpu_custom_call.1} parent=27 // pred_check
          %p249 = pneg %p248
        $region42: #{tpu_custom_call.1} parent=27 // pred_check_branch
          %251 = sbr.rel (%p249) target = $region44
        $region43: #{tpu_custom_call.1} parent=27 // pred_region
          %v252 = vld [vmem:[#allocation2] sm:$0xf]
          %v253 = vld [vmem:[#allocation6] sm:$0xff]
          %v254 = vld [vmem:[#allocation6 + $0x8] sm:$0xff]
          %v255 = vld [vmem:[#allocation2 + $0x1] sm:$0xf]
          %s256 = scalar_lea.vmem [#allocation6], 16
          %v257 = vld [vmem:[%s256] sm:$0xff]
          %v258 = vld [vmem:[%s256 + $0x8] sm:$0xff]
          %v260 = vsel %vm205, %v255, 0
          %262 = vmatprep.subr.mxu0 0.0
          %263 = vmatpush1.msra.mxu0 %v257
          %264 = vmatprep.subr.mxu0 0.0
          %265 = vmatpush1.msra.mxu0 %v258
          %266 = vmatprep.subr.mxu0 0.0
          %267 = vmatpush1.msra.mxu0 0.0
          %268 = vmatprep.subr.mxu0 0.0
          %269 = vmatpush1.msra.mxu0 0.0
          %270 = vmatprep.subr.mxu0 0.0
          %271 = vmatpush1.msra.mxu0 0.0
          %272 = vmatprep.subr.mxu0 0.0
          %273 = vmatpush1.msra.mxu0 0.0
          %274 = vmatprep.subr.mxu0 0.0
          %275 = vmatpush1.msra.mxu0 0.0
          %276 = vmatprep.subr.mxu0 0.0
          %277 = vmatpush1.msra.mxu0 0.0
          %278 = vmatprep.subr.mxu0 0.0
          %279 = vmatpush1.msra.mxu0 0.0
          %280 = vmatprep.subr.mxu0 0.0
          %281 = vmatpush1.msra.mxu0 0.0
          %282 = vmatprep.subr.mxu0 0.0
          %283 = vmatpush1.msra.mxu0 0.0
          %284 = vmatprep.subr.mxu0 0.0
          %285 = vmatpush1.msra.mxu0 0.0
          %286 = vmatprep.subr.mxu0 0.0
          %287 = vmatpush1.msra.mxu0 0.0
          %288 = vmatprep.subr.mxu0 0.0
          %289 = vmatpush1.msra.mxu0 0.0
          %290 = vmatprep.subr.mxu0 0.0
          %291 = vmatpush1.msra.mxu0 0.0
          %292 = vmatprep.subr.mxu0 0.0
          %293 = vmatpush1.msra.mxu0 0.0
          %294 = vmatprep.subr.mxu0 0.0
          %295 = vmatpush1.msra.mxu0 0.0
          %296 = vmatprep.subr.mxu0 0.0
          %297 = vmatpush1.msra.mxu0 0.0
          %298 = vmatprep.subr.mxu0 0.0
          %299 = vmatpush1.msra.mxu0 0.0
          %300 = vmatprep.subr.mxu0 0.0
          %301 = vmatpush1.msra.mxu0 0.0
          %302 = vmatprep.subr.mxu0 0.0
          %303 = vmatpush1.msra.mxu0 0.0
          %304 = vmatprep.subr.mxu0 0.0
          %305 = vmatpush1.msra.mxu0 0.0
          %306 = vmatprep.subr.mxu0 0.0
          %307 = vmatpush1.msra.mxu0 0.0
          %308 = vmatprep.subr.mxu0 0.0
          %309 = vmatpush1.msra.mxu0 0.0
          %310 = vmatprep.subr.mxu0 0.0
          %311 = vmatpush1.msra.mxu0 0.0
          %312 = vmatprep.subr.mxu0 0.0
          %313 = vmatpush1.msra.mxu0 0.0
          %314 = vmatprep.subr.mxu0 0.0
          %315 = vmatpush1.msra.mxu0 0.0
          %316 = vmatprep.subr.mxu0 0.0
          %317 = vmatpush1.msra.mxu0 0.0
          %318 = vmatprep.subr.mxu0 0.0
          %319 = vmatpush1.msra.mxu0 0.0
          %320 = vmatprep.subr.mxu0 0.0
          %321 = vmatpush1.msra.mxu0 0.0
          %322 = vmatprep.subr.mxu0 0.0
          %323 = vmatpush1.msra.mxu0 0.0
          %324 = vmatprep.subr.mxu0 0.0
          %325 = vmatpush1.msra.mxu0 0.0
          %326 = vmatprep.mubr.f32.mxu0 0.0
          %327 = vmatmul.mubr.f32.gmra.mrb[0].mxu0 %v260
          %v328 = vpop.f32.mrb[0].mxu0
          %v329 = vadd.f32 0.0, %v328
          %v330 = vpop.f32.mrb[0].mxu0
          %331 = vdwg.mxu0
          %v333 = vsel %vm205, %v252, 0
          %335 = vmatprep.subr.mxu0 0.0
          %336 = vmatpush1.msra.mxu0 %v253
          %337 = vmatprep.subr.mxu0 0.0
          %338 = vmatpush1.msra.mxu0 %v254
          %339 = vmatprep.subr.mxu0 0.0
          %340 = vmatpush1.msra.mxu0 0.0
          %341 = vmatprep.subr.mxu0 0.0
          %342 = vmatpush1.msra.mxu0 0.0
          %343 = vmatprep.subr.mxu0 0.0
          %344 = vmatpush1.msra.mxu0 0.0
          %345 = vmatprep.subr.mxu0 0.0
          %346 = vmatpush1.msra.mxu0 0.0
          %347 = vmatprep.subr.mxu0 0.0
          %348 = vmatpush1.msra.mxu0 0.0
          %349 = vmatprep.subr.mxu0 0.0
          %350 = vmatpush1.msra.mxu0 0.0
          %351 = vmatprep.subr.mxu0 0.0
          %352 = vmatpush1.msra.mxu0 0.0
          %353 = vmatprep.subr.mxu0 0.0
          %354 = vmatpush1.msra.mxu0 0.0
          %355 = vmatprep.subr.mxu0 0.0
          %356 = vmatpush1.msra.mxu0 0.0
          %357 = vmatprep.subr.mxu0 0.0
          %358 = vmatpush1.msra.mxu0 0.0
          %359 = vmatprep.subr.mxu0 0.0
          %360 = vmatpush1.msra.mxu0 0.0
          %361 = vmatprep.subr.mxu0 0.0
          %362 = vmatpush1.msra.mxu0 0.0
          %363 = vmatprep.subr.mxu0 0.0
          %364 = vmatpush1.msra.mxu0 0.0
          %365 = vmatprep.subr.mxu0 0.0
          %366 = vmatpush1.msra.mxu0 0.0
          %367 = vmatprep.subr.mxu0 0.0
          %368 = vmatpush1.msra.mxu0 0.0
          %369 = vmatprep.subr.mxu0 0.0
          %370 = vmatpush1.msra.mxu0 0.0
          %371 = vmatprep.subr.mxu0 0.0
          %372 = vmatpush1.msra.mxu0 0.0
          %373 = vmatprep.subr.mxu0 0.0
          %374 = vmatpush1.msra.mxu0 0.0
          %375 = vmatprep.subr.mxu0 0.0
          %376 = vmatpush1.msra.mxu0 0.0
          %377 = vmatprep.subr.mxu0 0.0
          %378 = vmatpush1.msra.mxu0 0.0
          %379 = vmatprep.subr.mxu0 0.0
          %380 = vmatpush1.msra.mxu0 0.0
          %381 = vmatprep.subr.mxu0 0.0
          %382 = vmatpush1.msra.mxu0 0.0
          %383 = vmatprep.subr.mxu0 0.0
          %384 = vmatpush1.msra.mxu0 0.0
          %385 = vmatprep.subr.mxu0 0.0
          %386 = vmatpush1.msra.mxu0 0.0
          %387 = vmatprep.subr.mxu0 0.0
          %388 = vmatpush1.msra.mxu0 0.0
          %389 = vmatprep.subr.mxu0 0.0
          %390 = vmatpush1.msra.mxu0 0.0
          %391 = vmatprep.subr.mxu0 0.0
          %392 = vmatpush1.msra.mxu0 0.0
          %393 = vmatprep.subr.mxu0 0.0
          %394 = vmatpush1.msra.mxu0 0.0
          %395 = vmatprep.subr.mxu0 0.0
          %396 = vmatpush1.msra.mxu0 0.0
          %397 = vmatprep.subr.mxu0 0.0
          %398 = vmatpush1.msra.mxu0 0.0
          %399 = vmatprep.mubr.f32.mxu0 0.0
          %400 = vmatmul.mubr.f32.gmra.mrb[0].mxu0 %v333
          %v401 = vpop.f32.mrb[0].mxu0
          %v402 = vadd.f32 %v329, %v401
          %v403 = vpop.f32.mrb[0].mxu0
          %404 = vdwg.mxu0
          %v405 = vld [vmem:[#allocation2 + $0x2] sm:$0xf]
          %s406 = scalar_lea.vmem [#allocation6], 32
          %v407 = vld [vmem:[%s406] sm:$0xff]
          %v408 = vld [vmem:[%s406 + $0x8] sm:$0xff]
          %v410 = vsel %vm205, %v405, 0
          %412 = vmatprep.subr.mxu0 0.0
          %413 = vmatpush1.msra.mxu0 %v407
          %414 = vmatprep.subr.mxu0 0.0
          %415 = vmatpush1.msra.mxu0 %v408
          %416 = vmatprep.subr.mxu0 0.0
          %417 = vmatpush1.msra.mxu0 0.0
          %418 = vmatprep.subr.mxu0 0.0
          %419 = vmatpush1.msra.mxu0 0.0
          %420 = vmatprep.subr.mxu0 0.0
          %421 = vmatpush1.msra.mxu0 0.0
          %422 = vmatprep.subr.mxu0 0.0
          %423 = vmatpush1.msra.mxu0 0.0
          %424 = vmatprep.subr.mxu0 0.0
          %425 = vmatpush1.msra.mxu0 0.0
          %426 = vmatprep.subr.mxu0 0.0
          %427 = vmatpush1.msra.mxu0 0.0
          %428 = vmatprep.subr.mxu0 0.0
          %429 = vmatpush1.msra.mxu0 0.0
          %430 = vmatprep.subr.mxu0 0.0
          %431 = vmatpush1.msra.mxu0 0.0
          %432 = vmatprep.subr.mxu0 0.0
          %433 = vmatpush1.msra.mxu0 0.0
          %434 = vmatprep.subr.mxu0 0.0
          %435 = vmatpush1.msra.mxu0 0.0
          %436 = vmatprep.subr.mxu0 0.0
          %437 = vmatpush1.msra.mxu0 0.0
          %438 = vmatprep.subr.mxu0 0.0
          %439 = vmatpush1.msra.mxu0 0.0
          %440 = vmatprep.subr.mxu0 0.0
          %441 = vmatpush1.msra.mxu0 0.0
          %442 = vmatprep.subr.mxu0 0.0
          %443 = vmatpush1.msra.mxu0 0.0
          %444 = vmatprep.subr.mxu0 0.0
          %445 = vmatpush1.msra.mxu0 0.0
          %446 = vmatprep.subr.mxu0 0.0
          %447 = vmatpush1.msra.mxu0 0.0
          %448 = vmatprep.subr.mxu0 0.0
          %449 = vmatpush1.msra.mxu0 0.0
          %450 = vmatprep.subr.mxu0 0.0
          %451 = vmatpush1.msra.mxu0 0.0
          %452 = vmatprep.subr.mxu0 0.0
          %453 = vmatpush1.msra.mxu0 0.0
          %454 = vmatprep.subr.mxu0 0.0
          %455 = vmatpush1.msra.mxu0 0.0
          %456 = vmatprep.subr.mxu0 0.0
          %457 = vmatpush1.msra.mxu0 0.0
          %458 = vmatprep.subr.mxu0 0.0
          %459 = vmatpush1.msra.mxu0 0.0
          %460 = vmatprep.subr.mxu0 0.0
          %461 = vmatpush1.msra.mxu0 0.0
          %462 = vmatprep.subr.mxu0 0.0
          %463 = vmatpush1.msra.mxu0 0.0
          %464 = vmatprep.subr.mxu0 0.0
          %465 = vmatpush1.msra.mxu0 0.0
          %466 = vmatprep.subr.mxu0 0.0
          %467 = vmatpush1.msra.mxu0 0.0
          %468 = vmatprep.subr.mxu0 0.0
          %469 = vmatpush1.msra.mxu0 0.0
          %470 = vmatprep.subr.mxu0 0.0
          %471 = vmatpush1.msra.mxu0 0.0
          %472 = vmatprep.subr.mxu0 0.0
          %473 = vmatpush1.msra.mxu0 0.0
          %474 = vmatprep.subr.mxu0 0.0
          %475 = vmatpush1.msra.mxu0 0.0
          %476 = vmatprep.mubr.f32.mxu0 0.0
          %477 = vmatmul.mubr.f32.gmra.mrb[0].mxu0 %v410
          %v478 = vpop.f32.mrb[0].mxu0
          %v479 = vadd.f32 0.0, %v478
          %v480 = vpop.f32.mrb[0].mxu0
          %481 = vdwg.mxu0
          %v482 = vadd.f32 %v402, %v479
          %v483 = vld [vmem:[#allocation2 + $0x3] sm:$0xf]
          %s484 = scalar_lea.vmem [#allocation6], 48
          %v485 = vld [vmem:[%s484] sm:$0xff]
          %v486 = vld [vmem:[%s484 + $0x8] sm:$0xff]
          %v488 = vsel %vm205, %v483, 0
          %490 = vmatprep.subr.mxu0 0.0
          %491 = vmatpush1.msra.mxu0 %v485
          %492 = vmatprep.subr.mxu0 0.0
          %493 = vmatpush1.msra.mxu0 %v486
          %494 = vmatprep.subr.mxu0 0.0
          %495 = vmatpush1.msra.mxu0 0.0
          %496 = vmatprep.subr.mxu0 0.0
          %497 = vmatpush1.msra.mxu0 0.0
          %498 = vmatprep.subr.mxu0 0.0
          %499 = vmatpush1.msra.mxu0 0.0
          %500 = vmatprep.subr.mxu0 0.0
          %501 = vmatpush1.msra.mxu0 0.0
          %502 = vmatprep.subr.mxu0 0.0
          %503 = vmatpush1.msra.mxu0 0.0
          %504 = vmatprep.subr.mxu0 0.0
          %505 = vmatpush1.msra.mxu0 0.0
          %506 = vmatprep.subr.mxu0 0.0
          %507 = vmatpush1.msra.mxu0 0.0
          %508 = vmatprep.subr.mxu0 0.0
          %509 = vmatpush1.msra.mxu0 0.0
          %510 = vmatprep.subr.mxu0 0.0
          %511 = vmatpush1.msra.mxu0 0.0
          %512 = vmatprep.subr.mxu0 0.0
          %513 = vmatpush1.msra.mxu0 0.0
          %514 = vmatprep.subr.mxu0 0.0
          %515 = vmatpush1.msra.mxu0 0.0
          %516 = vmatprep.subr.mxu0 0.0
          %517 = vmatpush1.msra.mxu0 0.0
          %518 = vmatprep.subr.mxu0 0.0
          %519 = vmatpush1.msra.mxu0 0.0
          %520 = vmatprep.subr.mxu0 0.0
          %521 = vmatpush1.msra.mxu0 0.0
          %522 = vmatprep.subr.mxu0 0.0
          %523 = vmatpush1.msra.mxu0 0.0
          %524 = vmatprep.subr.mxu0 0.0
          %525 = vmatpush1.msra.mxu0 0.0
          %526 = vmatprep.subr.mxu0 0.0
          %527 = vmatpush1.msra.mxu0 0.0
          %528 = vmatprep.subr.mxu0 0.0
          %529 = vmatpush1.msra.mxu0 0.0
          %530 = vmatprep.subr.mxu0 0.0
          %531 = vmatpush1.msra.mxu0 0.0
          %532 = vmatprep.subr.mxu0 0.0
          %533 = vmatpush1.msra.mxu0 0.0
          %534 = vmatprep.subr.mxu0 0.0
          %535 = vmatpush1.msra.mxu0 0.0
          %536 = vmatprep.subr.mxu0 0.0
          %537 = vmatpush1.msra.mxu0 0.0
          %538 = vmatprep.subr.mxu0 0.0
          %539 = vmatpush1.msra.mxu0 0.0
          %540 = vmatprep.subr.mxu0 0.0
          %541 = vmatpush1.msra.mxu0 0.0
          %542 = vmatprep.subr.mxu0 0.0
          %543 = vmatpush1.msra.mxu0 0.0
          %544 = vmatprep.subr.mxu0 0.0
          %545 = vmatpush1.msra.mxu0 0.0
          %546 = vmatprep.subr.mxu0 0.0
          %547 = vmatpush1.msra.mxu0 0.0
          %548 = vmatprep.subr.mxu0 0.0
          %549 = vmatpush1.msra.mxu0 0.0
          %550 = vmatprep.subr.mxu0 0.0
          %551 = vmatpush1.msra.mxu0 0.0
          %552 = vmatprep.subr.mxu0 0.0
          %553 = vmatpush1.msra.mxu0 0.0
          %554 = vmatprep.mubr.f32.mxu0 0.0
          %555 = vmatmul.mubr.f32.gmra.mrb[0].mxu0 %v488
          %v556 = vpop.f32.mrb[0].mxu0
          %v557 = vadd.f32 0.0, %v556
          %v558 = vpop.f32.mrb[0].mxu0
          %559 = vdwg.mxu0
          %v560 = vadd.f32 %v482, %v557
          %v561 = vld [vmem:[#allocation2 + $0x4] sm:$0xf]
          %s562 = scalar_lea.vmem [#allocation6], 64
          %v563 = vld [vmem:[%s562] sm:$0xff]
          %v564 = vld [vmem:[%s562 + $0x8] sm:$0xff]
          %v566 = vsel %vm205, %v561, 0
          %568 = vmatprep.subr.mxu0 0.0
          %569 = vmatpush1.msra.mxu0 %v563
          %570 = vmatprep.subr.mxu0 0.0
          %571 = vmatpush1.msra.mxu0 %v564
          %572 = vmatprep.subr.mxu0 0.0
          %573 = vmatpush1.msra.mxu0 0.0
          %574 = vmatprep.subr.mxu0 0.0
          %575 = vmatpush1.msra.mxu0 0.0
          %576 = vmatprep.subr.mxu0 0.0
          %577 = vmatpush1.msra.mxu0 0.0
          %578 = vmatprep.subr.mxu0 0.0
          %579 = vmatpush1.msra.mxu0 0.0
          %580 = vmatprep.subr.mxu0 0.0
          %581 = vmatpush1.msra.mxu0 0.0
          %582 = vmatprep.subr.mxu0 0.0
          %583 = vmatpush1.msra.mxu0 0.0
          %584 = vmatprep.subr.mxu0 0.0
          %585 = vmatpush1.msra.mxu0 0.0
          %586 = vmatprep.subr.mxu0 0.0
          %587 = vmatpush1.msra.mxu0 0.0
          %588 = vmatprep.subr.mxu0 0.0
          %589 = vmatpush1.msra.mxu0 0.0
          %590 = vmatprep.subr.mxu0 0.0
          %591 = vmatpush1.msra.mxu0 0.0
          %592 = vmatprep.subr.mxu0 0.0
          %593 = vmatpush1.msra.mxu0 0.0
          %594 = vmatprep.subr.mxu0 0.0
          %595 = vmatpush1.msra.mxu0 0.0
          %596 = vmatprep.subr.mxu0 0.0
          %597 = vmatpush1.msra.mxu0 0.0
          %598 = vmatprep.subr.mxu0 0.0
          %599 = vmatpush1.msra.mxu0 0.0
          %600 = vmatprep.subr.mxu0 0.0
          %601 = vmatpush1.msra.mxu0 0.0
          %602 = vmatprep.subr.mxu0 0.0
          %603 = vmatpush1.msra.mxu0 0.0
          %604 = vmatprep.subr.mxu0 0.0
          %605 = vmatpush1.msra.mxu0 0.0
          %606 = vmatprep.subr.mxu0 0.0
          %607 = vmatpush1.msra.mxu0 0.0
          %608 = vmatprep.subr.mxu0 0.0
          %609 = vmatpush1.msra.mxu0 0.0
          %610 = vmatprep.subr.mxu0 0.0
          %611 = vmatpush1.msra.mxu0 0.0
          %612 = vmatprep.subr.mxu0 0.0
          %613 = vmatpush1.msra.mxu0 0.0
          %614 = vmatprep.subr.mxu0 0.0
          %615 = vmatpush1.msra.mxu0 0.0
          %616 = vmatprep.subr.mxu0 0.0
          %617 = vmatpush1.msra.mxu0 0.0
          %618 = vmatprep.subr.mxu0 0.0
          %619 = vmatpush1.msra.mxu0 0.0
          %620 = vmatprep.subr.mxu0 0.0
          %621 = vmatpush1.msra.mxu0 0.0
          %622 = vmatprep.subr.mxu0 0.0
          %623 = vmatpush1.msra.mxu0 0.0
          %624 = vmatprep.subr.mxu0 0.0
          %625 = vmatpush1.msra.mxu0 0.0
          %626 = vmatprep.subr.mxu0 0.0
          %627 = vmatpush1.msra.mxu0 0.0
          %628 = vmatprep.subr.mxu0 0.0
          %629 = vmatpush1.msra.mxu0 0.0
          %630 = vmatprep.subr.mxu0 0.0
          %631 = vmatpush1.msra.mxu0 0.0
          %632 = vmatprep.mubr.f32.mxu0 0.0
          %633 = vmatmul.mubr.f32.gmra.mrb[0].mxu0 %v566
          %v634 = vpop.f32.mrb[0].mxu0
          %v635 = vadd.f32 0.0, %v634
          %v636 = vpop.f32.mrb[0].mxu0
          %637 = vdwg.mxu0
          %v638 = vadd.f32 %v560, %v635
          %v639 = vld [vmem:[#allocation2 + $0x5] sm:$0xf]
          %s640 = scalar_lea.vmem [#allocation6], 80
          %v641 = vld [vmem:[%s640] sm:$0xff]
          %v642 = vld [vmem:[%s640 + $0x8] sm:$0xff]
          %v644 = vsel %vm205, %v639, 0
          %646 = vmatprep.subr.mxu0 0.0
          %647 = vmatpush1.msra.mxu0 %v641
          %648 = vmatprep.subr.mxu0 0.0
          %649 = vmatpush1.msra.mxu0 %v642
          %650 = vmatprep.subr.mxu0 0.0
          %651 = vmatpush1.msra.mxu0 0.0
          %652 = vmatprep.subr.mxu0 0.0
          %653 = vmatpush1.msra.mxu0 0.0
          %654 = vmatprep.subr.mxu0 0.0
          %655 = vmatpush1.msra.mxu0 0.0
          %656 = vmatprep.subr.mxu0 0.0
          %657 = vmatpush1.msra.mxu0 0.0
          %658 = vmatprep.subr.mxu0 0.0
          %659 = vmatpush1.msra.mxu0 0.0
          %660 = vmatprep.subr.mxu0 0.0
          %661 = vmatpush1.msra.mxu0 0.0
          %662 = vmatprep.subr.mxu0 0.0
          %663 = vmatpush1.msra.mxu0 0.0
          %664 = vmatprep.subr.mxu0 0.0
          %665 = vmatpush1.msra.mxu0 0.0
          %666 = vmatprep.subr.mxu0 0.0
          %667 = vmatpush1.msra.mxu0 0.0
          %668 = vmatprep.subr.mxu0 0.0
          %669 = vmatpush1.msra.mxu0 0.0
          %670 = vmatprep.subr.mxu0 0.0
          %671 = vmatpush1.msra.mxu0 0.0
          %672 = vmatprep.subr.mxu0 0.0
          %673 = vmatpush1.msra.mxu0 0.0
          %674 = vmatprep.subr.mxu0 0.0
          %675 = vmatpush1.msra.mxu0 0.0
          %676 = vmatprep.subr.mxu0 0.0
          %677 = vmatpush1.msra.mxu0 0.0
          %678 = vmatprep.subr.mxu0 0.0
          %679 = vmatpush1.msra.mxu0 0.0
          %680 = vmatprep.subr.mxu0 0.0
          %681 = vmatpush1.msra.mxu0 0.0
          %682 = vmatprep.subr.mxu0 0.0
          %683 = vmatpush1.msra.mxu0 0.0
          %684 = vmatprep.subr.mxu0 0.0
          %685 = vmatpush1.msra.mxu0 0.0
          %686 = vmatprep.subr.mxu0 0.0
          %687 = vmatpush1.msra.mxu0 0.0
          %688 = vmatprep.subr.mxu0 0.0
          %689 = vmatpush1.msra.mxu0 0.0
          %690 = vmatprep.subr.mxu0 0.0
          %691 = vmatpush1.msra.mxu0 0.0
          %692 = vmatprep.subr.mxu0 0.0
          %693 = vmatpush1.msra.mxu0 0.0
          %694 = vmatprep.subr.mxu0 0.0
          %695 = vmatpush1.msra.mxu0 0.0
          %696 = vmatprep.subr.mxu0 0.0
          %697 = vmatpush1.msra.mxu0 0.0
          %698 = vmatprep.subr.mxu0 0.0
          %699 = vmatpush1.msra.mxu0 0.0
          %700 = vmatprep.subr.mxu0 0.0
          %701 = vmatpush1.msra.mxu0 0.0
          %702 = vmatprep.subr.mxu0 0.0
          %703 = vmatpush1.msra.mxu0 0.0
          %704 = vmatprep.subr.mxu0 0.0
          %705 = vmatpush1.msra.mxu0 0.0
          %706 = vmatprep.subr.mxu0 0.0
          %707 = vmatpush1.msra.mxu0 0.0
          %708 = vmatprep.subr.mxu0 0.0
          %709 = vmatpush1.msra.mxu0 0.0
          %710 = vmatprep.mubr.f32.mxu0 0.0
          %711 = vmatmul.mubr.f32.gmra.mrb[0].mxu0 %v644
          %v712 = vpop.f32.mrb[0].mxu0
          %v713 = vadd.f32 0.0, %v712
          %v714 = vpop.f32.mrb[0].mxu0
          %715 = vdwg.mxu0
          %v716 = vadd.f32 %v638, %v713
          %v717 = vld [vmem:[#allocation2 + $0x6] sm:$0xf]
          %s718 = scalar_lea.vmem [#allocation6], 96
          %v719 = vld [vmem:[%s718] sm:$0xff]
          %v720 = vld [vmem:[%s718 + $0x8] sm:$0xff]
          %v722 = vsel %vm205, %v717, 0
          %724 = vmatprep.subr.mxu0 0.0
          %725 = vmatpush1.msra.mxu0 %v719
          %726 = vmatprep.subr.mxu0 0.0
          %727 = vmatpush1.msra.mxu0 %v720
          %728 = vmatprep.subr.mxu0 0.0
          %729 = vmatpush1.msra.mxu0 0.0
          %730 = vmatprep.subr.mxu0 0.0
          %731 = vmatpush1.msra.mxu0 0.0
          %732 = vmatprep.subr.mxu0 0.0
          %733 = vmatpush1.msra.mxu0 0.0
          %734 = vmatprep.subr.mxu0 0.0
          %735 = vmatpush1.msra.mxu0 0.0
          %736 = vmatprep.subr.mxu0 0.0
          %737 = vmatpush1.msra.mxu0 0.0
          %738 = vmatprep.subr.mxu0 0.0
          %739 = vmatpush1.msra.mxu0 0.0
          %740 = vmatprep.subr.mxu0 0.0
          %741 = vmatpush1.msra.mxu0 0.0
          %742 = vmatprep.subr.mxu0 0.0
          %743 = vmatpush1.msra.mxu0 0.0
          %744 = vmatprep.subr.mxu0 0.0
          %745 = vmatpush1.msra.mxu0 0.0
          %746 = vmatprep.subr.mxu0 0.0
          %747 = vmatpush1.msra.mxu0 0.0
          %748 = vmatprep.subr.mxu0 0.0
          %749 = vmatpush1.msra.mxu0 0.0
          %750 = vmatprep.subr.mxu0 0.0
          %751 = vmatpush1.msra.mxu0 0.0
          %752 = vmatprep.subr.mxu0 0.0
          %753 = vmatpush1.msra.mxu0 0.0
          %754 = vmatprep.subr.mxu0 0.0
          %755 = vmatpush1.msra.mxu0 0.0
          %756 = vmatprep.subr.mxu0 0.0
          %757 = vmatpush1.msra.mxu0 0.0
          %758 = vmatprep.subr.mxu0 0.0
          %759 = vmatpush1.msra.mxu0 0.0
          %760 = vmatprep.subr.mxu0 0.0
          %761 = vmatpush1.msra.mxu0 0.0
          %762 = vmatprep.subr.mxu0 0.0
          %763 = vmatpush1.msra.mxu0 0.0
          %764 = vmatprep.subr.mxu0 0.0
          %765 = vmatpush1.msra.mxu0 0.0
          %766 = vmatprep.subr.mxu0 0.0
          %767 = vmatpush1.msra.mxu0 0.0
          %768 = vmatprep.subr.mxu0 0.0
          %769 = vmatpush1.msra.mxu0 0.0
          %770 = vmatprep.subr.mxu0 0.0
          %771 = vmatpush1.msra.mxu0 0.0
          %772 = vmatprep.subr.mxu0 0.0
          %773 = vmatpush1.msra.mxu0 0.0
          %774 = vmatprep.subr.mxu0 0.0
          %775 = vmatpush1.msra.mxu0 0.0
          %776 = vmatprep.subr.mxu0 0.0
          %777 = vmatpush1.msra.mxu0 0.0
          %778 = vmatprep.subr.mxu0 0.0
          %779 = vmatpush1.msra.mxu0 0.0
          %780 = vmatprep.subr.mxu0 0.0
          %781 = vmatpush1.msra.mxu0 0.0
          %782 = vmatprep.subr.mxu0 0.0
          %783 = vmatpush1.msra.mxu0 0.0
          %784 = vmatprep.subr.mxu0 0.0
          %785 = vmatpush1.msra.mxu0 0.0
          %786 = vmatprep.subr.mxu0 0.0
          %787 = vmatpush1.msra.mxu0 0.0
          %788 = vmatprep.mubr.f32.mxu0 0.0
          %789 = vmatmul.mubr.f32.gmra.mrb[0].mxu0 %v722
          %v790 = vpop.f32.mrb[0].mxu0
          %v791 = vadd.f32 0.0, %v790
          %v792 = vpop.f32.mrb[0].mxu0
          %793 = vdwg.mxu0
          %v794 = vadd.f32 %v716, %v791
          %v795 = vsub.f32 0.0, %v794
          %v796 = vmul.f32 %v795, 1.442695
          %v797 = vpow.pop %v796
          %v798 = vadd.f32 %v797, 1.0
          %v799 = vrcp.pop %v798
          %v800 = vmul.f32 1.0, %v799
          %801 = vst.msk [vmem:[%s191] sm:$0xf] %vm246, %v800
        $region44: #{tpu_custom_call.1} parent=27 // pred_fallthru
          _
        %s802 = sand.u32 %s89, 1
        %s803 = scalar_lea.sflag [#allocation5], %s802
        %s804 = sand.u32 %s89, 1
        %s805 = smul.addr %s804, 4
        %s806 = scalar_lea.vmem [#allocation8], %s805
        // Predicated region
        $region45: #{tpu_custom_call.1} parent=27 // pred_check
          %p807 = pneg %p99
        $region46: #{tpu_custom_call.1} parent=27 // pred_check_branch
          %809 = sbr.rel (%p807) target = $region48
        $region47: #{tpu_custom_call.1} parent=27 // pred_region
          %s811 = ssub.s32 64, 64
          %812 = vsyncadd %s803, %s811
          %s813 = smul.addr %s24, 64
          %s814 = scalar_lea.hbm %s2, %s813
          %s816 = sshll.u32 %s806, 4
          %s817 = int_to_ptr.vmem [resolvable:$true] %s816
          %819 = dma.vmem_to_hbm [thread:$0]  %s817, 64, %s814, %s803
        $region48: #{tpu_custom_call.1} parent=27 // pred_fallthru
          _
      $region28: #{tpu_custom_call.1} parent=5 // pred_fallthru
        _
      %p820 = scmp.le.s32.totalorder 2, %s15
      // Predicated region
      $region49: #{tpu_custom_call.1} parent=5 // pred_check
        %p821 = pneg %p820
      $region50: #{tpu_custom_call.1} parent=5 // pred_check_branch
        %823 = sbr.rel (%p821) target = $region52
      $region51: #{tpu_custom_call.1} parent=5 // pred_region
        %s824 = ssub.s32 %s15, 2
        // Predicated region
        $region53: #{tpu_custom_call.1} parent=51 // pred_check
          %p825 = pneg %p105
        $region54: #{tpu_custom_call.1} parent=51 // pred_check_branch
          %827 = sbr.rel (%p825) target = $region56
        $region55: #{tpu_custom_call.1} parent=51 // pred_region
          %s828 = sand.u32 %s90, 1
          %s829 = scalar_lea.sflag [#allocation5], %s828
          %s830 = sand.u32 %s90, 1
          %s831 = smul.addr %s830, 4
          %s832 = scalar_lea.vmem [#allocation8], %s831
          %833 = dma.done %s829, 64
        $region56: #{tpu_custom_call.1} parent=51 // pred_fallthru
          _
      $region52: #{tpu_custom_call.1} parent=5 // pred_fallthru
        _
    $region6: #{tpu_custom_call.1} parent=1 // loop_footer
      %s19 = sadd.s32 1, %s15
    $region7: #{tpu_custom_call.1} parent=1 // loop_footer_branch
      %14 = sbr.rel target = $region3
    $region8: #{tpu_custom_call.1} parent=1 // loop_exit
      _
    %834 = vsyncpa [#allocation4], 1
    %s835 = scalar_lea.sflag [#allocation4], 1
    %836 = vsyncpa %s835, 1
    %837 = vsyncpa [#allocation7], 1
    %838 = vsyncpa [#allocation5], 1
    %s839 = scalar_lea.sflag [#allocation5], 1
    %840 = vsyncpa %s839, 1

</llo_original>
